<compile_context>
chip_gen: v5e
topology: v5e:2x2
jax: 0.10.0
libtpu: 0.0.40
codegen_flags: <defaults>
</compile_context>

<pallas_src>
import functools

import jax
import jax.numpy as jnp
from jax import lax
from jax.experimental import pallas as pl
from jax.experimental.pallas import tpu as pltpu

_MIB = 1024 * 1024


def _round_up(x, m):
    return -(-x // m) * m


def _vmem_2d_bytes(r, c, itemsize=4):
    """VMEM footprint of a (r, c) buffer, padded to the (8, 128) f32 tile."""
    return _round_up(max(r, 1), 8) * _round_up(max(c, 1), 128) * itemsize


def _physical_vmem_bytes():
    try:
        return int(pltpu.get_tpu_info().vmem_capacity_bytes)
    except Exception:
        return 64 * _MIB  # v7x floor; v5e/v6e have 128 MiB


def _plan_tiles(M, K, itemsize, fixed_vmem_bytes, feat_buffers=2):
    """Pick the K-tile width from the actual VMEM footprint.

    Returns (tk, grid_k, ragged, vmem_limit_bytes)."""
    physical = _physical_vmem_bytes()
    usable = max(physical - 8 * _MIB, 24 * _MIB)   # leave compiler headroom
    budget = usable - fixed_vmem_bytes             # bytes left for feature tiles
    rows = _round_up(M, 8)

    full_bytes = feat_buffers * rows * _round_up(K, 128) * itemsize
    if full_bytes <= budget:
        # Whole K fits: a single block equal to the full lane extent.
        # No padding, no masking, one grid step.
        tk, grid_k, ragged = K, 1, False
        feat_bytes = full_bytes
    else:
        per_128 = feat_buffers * rows * 128 * itemsize
        tk = max(budget // per_128, 1) * 128
        if tk >= 256:
            tk = (tk // 256) * 256  # align multi-step tiles to the 256-wide MXU
        grid_k = pl.cdiv(K, tk)
        ragged = (K % tk) != 0
        feat_bytes = feat_buffers * rows * tk * itemsize

    footprint = fixed_vmem_bytes + feat_bytes
    vmem_limit = int(min(physical, max(footprint + 8 * _MIB, 32 * _MIB)))
    return tk, grid_k, ragged, vmem_limit


def _gram_dot(f):
    # (M, tk) x (M, tk) contracting the lane axis of both -> (M, M), f32 acc on MXU.
    return lax.dot_general(
        f, f, (((1,), (1,)), ((), ())), preferred_element_type=jnp.float32)


def _masked_tile(feat_ref, k, tk, k_total, ragged):
    """Zero the columns past the true K on the (only) ragged last tile."""
    f = feat_ref[...]
    if ragged:
        col = lax.broadcasted_iota(jnp.int32, f.shape, 1)
        f = jnp.where(col + k * tk < k_total, f, jnp.zeros_like(f))
    return f


# ----------------------------- gram matrix kernel -----------------------------
def _gram_kernel(feat_ref, g_ref, *, scale, k_total, tk, ragged):
    k = pl.program_id(0)

    @pl.when(k == 0)
    def _():
        g_ref[...] = jnp.zeros_like(g_ref)

    # Output block is grid-resident (index_map -> (0, 0) for every k): accumulate
    # straight into it.
    g_ref[...] += _gram_dot(_masked_tile(feat_ref, k, tk, k_total, ragged))

    @pl.when(k == pl.num_programs(0) - 1)
    def _():
        g_ref[...] = g_ref[...] * scale


def gram_matrix(x):
    """G = (features @ features.T) / (a*b*c*d), features = x.reshape(a*b, c*d)."""
    a, b, c, d = x.shape
    M, K = a * b, c * d
    feats = x.reshape(M, K)
    itemsize = feats.dtype.itemsize
    fixed = 2 * _vmem_2d_bytes(M, M)  # resident (possibly double-buffered) output
    tk, grid_k, ragged, vmem_limit = _plan_tiles(M, K, itemsize, fixed)
    scale = 1.0 / float(a * b * c * d)
    kern = functools.partial(_gram_kernel, scale=scale, k_total=K, tk=tk,
                             ragged=ragged)
    cost = pl.CostEstimate(flops=2 * M * M * K, transcendentals=0,
                           bytes_accessed=M * K * itemsize + M * M * 4)
    return pl.pallas_call(
        kern,
        out_shape=jax.ShapeDtypeStruct((M, M), jnp.float32),
        grid_spec=pltpu.PrefetchScalarGridSpec(
            num_scalar_prefetch=0,
            grid=(grid_k,),
            in_specs=[pl.BlockSpec((M, tk), lambda k: (0, k))],
            out_specs=pl.BlockSpec((M, M), lambda k: (0, 0)),
        ),
        compiler_params=pltpu.CompilerParams(
            dimension_semantics=("arbitrary",),
            vmem_limit_bytes=vmem_limit),
        cost_estimate=cost,
    )(feats)


# ------------------------- fused gram + MSE loss kernel ------------------------
def _style_loss_kernel(feat_ref, tgt_hbm, loss_ref, acc_ref, tgt_vmem, tgt_sem,
                       *, scale, inv_mm, k_total, tk, ragged):
    k = pl.program_id(0)

    @pl.when(k == 0)
    def _():
        acc_ref[...] = jnp.zeros_like(acc_ref)
        loss_ref[0, 0] = jnp.float32(0.0)
        # Kick off the one-time target-gram DMA; it overlaps the K reduction.
        pltpu.make_async_copy(tgt_hbm, tgt_vmem, tgt_sem).start()

    acc_ref[...] += _gram_dot(_masked_tile(feat_ref, k, tk, k_total, ragged))

    @pl.when(k == pl.num_programs(0) - 1)
    def _():
        pltpu.make_async_copy(tgt_hbm, tgt_vmem, tgt_sem).wait()
        diff = acc_ref[...] * scale - tgt_vmem[...]
        loss_ref[0, 0] = jnp.sum(diff * diff) * inv_mm


def style_loss(x, target_gram):
    """mse_loss(gram_matrix(x), target_gram) in a single fused pallas_call."""
    a, b, c, d = x.shape
    M, K = a * b, c * d
    feats = x.reshape(M, K)
    target_gram = target_gram.astype(jnp.float32)
    itemsize = feats.dtype.itemsize
    # (M, M) f32 accumulator + single (M, M) f32 target copy (manual DMA).
    fixed = 2 * _vmem_2d_bytes(M, M)
    tk, grid_k, ragged, vmem_limit = _plan_tiles(M, K, itemsize, fixed)
    scale = 1.0 / float(a * b * c * d)
    inv_mm = 1.0 / float(M * M)
    kern = functools.partial(_style_loss_kernel, scale=scale, inv_mm=inv_mm,
                             k_total=K, tk=tk, ragged=ragged)
    cost = pl.CostEstimate(flops=2 * M * M * K + 3 * M * M, transcendentals=0,
                           bytes_accessed=M * K * itemsize + M * M * 4 + 4)
    loss = pl.pallas_call(
        kern,
        out_shape=jax.ShapeDtypeStruct((1, 1), jnp.float32),
        grid_spec=pltpu.PrefetchScalarGridSpec(
            num_scalar_prefetch=0,
            grid=(grid_k,),
            in_specs=[
                pl.BlockSpec((M, tk), lambda k: (0, k)),
                # Target gram stays in HBM; one manual async copy into a single
                # VMEM buffer (avoids two auto-pipeline buffers for a constant).
                pl.BlockSpec(memory_space=pl.ANY),
            ],
            out_specs=pl.BlockSpec(
                (1, 1), lambda k: (0, 0),
                memory_space=pltpu.MemorySpace.SMEM),
            scratch_shapes=[
                pltpu.VMEM((M, M), jnp.float32),   # gram accumulator
                pltpu.VMEM((M, M), jnp.float32),   # target copy
                pltpu.SemaphoreType.DMA,           # target DMA completion
            ],
        ),
        compiler_params=pltpu.CompilerParams(
            dimension_semantics=("arbitrary",),
            vmem_limit_bytes=vmem_limit),
        cost_estimate=cost,
    )(feats, target_gram)
    return loss[0, 0]


# --------------------------------- StyleLoss ----------------------------------
class StyleLoss:
    """Mirror of the PyTorch StyleLoss: stores the target gram at init; the
    forward computes the MSE between gram(input) and the target (stored on
    self.loss) and returns the input unchanged."""

    def __init__(self, target_feature):
        self.target = gram_matrix(target_feature)  # "detached" by construction
        self.loss = None

    def __call__(self, x):
        self.loss = style_loss(x, self.target)
        return x


# ------------------------------------ main ------------------------------------
if __name__ == "__main__":
    key = jax.random.PRNGKey(0)
    k1, k2 = jax.random.split(key)
    # NCHW, small shapes: batch=2, channels=4, spatial=16
    target_feature = jax.random.normal(k1, (2, 4, 16, 16), dtype=jnp.float32)
    x = jax.random.normal(k2, (2, 4, 16, 16), dtype=jnp.float32)

    module = StyleLoss(target_feature)
    out = module(x)
    jax.block_until_ready((out, module.loss))

    # reference check in plain JAX
    def ref_gram(v):
        a, b, c, d = v.shape
        f = v.reshape(a * b, c * d)
        return (f @ f.T) / (a * b * c * d)

    ref_loss = jnp.mean((ref_gram(x) - ref_gram(target_feature)) ** 2)
    assert jnp.allclose(out, x)
    assert jnp.allclose(module.loss, ref_loss, rtol=1e-5, atol=1e-6)

    print("KERNEL_OK")
</pallas_src>

<mosaic_0001>
module attributes {stable_mosaic.version = 11 : i64} {
  func.func @_gram_kernel(%arg0: i32, %arg1: memref<8x256xf32, #tpu.memory_space<vmem>>, %arg2: memref<8x8xf32, #tpu.memory_space<vmem>>) attributes {dimension_semantics = [#tpu.dimension_semantics<arbitrary>], iteration_bounds = array<i64: 1>, scalar_prefetch = 0 : i64, scratch_operands = 0 : i64, tpu.core_type = #tpu.core_type<tc>, window_params = [{transform_indices = @transform_0, window_bounds = array<i64: 8, 256>}, {pipeline_mode = #tpu.pipeline_mode<synchronous>, transform_indices = @transform_1, window_bounds = array<i64: 8, 8>}]} {
    %c0_i32 = arith.constant 0 : i32
    %0 = arith.cmpi eq, %arg0, %c0_i32 : i32
    %1 = arith.extui %0 : i1 to i32
    %c0_i32_0 = arith.constant 0 : i32
    %2 = arith.cmpi ne, %1, %c0_i32_0 : i32
    scf.if %2 {
      %cst_8 = arith.constant 0.000000e+00 : f32
      %11 = vector.broadcast %cst_8 : f32 to vector<8x8xf32>
      %c0_9 = arith.constant 0 : index
      %c0_10 = arith.constant 0 : index
      %12 = vector.load %arg2[%c0_9, %c0_10] : memref<8x8xf32, #tpu.memory_space<vmem>>, vector<8x8xf32>
      tpu.vector_store %arg2[%c0_9, %c0_10], %11 {strides = array<i32>} : memref<8x8xf32, #tpu.memory_space<vmem>>, vector<8x8xf32>,
    } else {
    }
    %c0 = arith.constant 0 : index
    %c0_1 = arith.constant 0 : index
    %3 = vector.load %arg2[%c0, %c0_1] : memref<8x8xf32, #tpu.memory_space<vmem>>, vector<8x8xf32>
    %c0_2 = arith.constant 0 : index
    %c0_3 = arith.constant 0 : index
    %4 = vector.load %arg1[%c0_2, %c0_3] : memref<8x256xf32, #tpu.memory_space<vmem>>, vector<8x256xf32>
    %cst = arith.constant dense<0.000000e+00> : vector<8x8xf32>
    %5 = tpu.matmul %4, %4, %cst {dimension_numbers = #tpu.dot_dimension_numbers<[1], [1], [0], [0], [0, 0, 1, 0], [], []>} : vector<8x256xf32>, vector<8x256xf32>, vector<8x8xf32> -> vector<8x8xf32>
    %6 = arith.addf %3, %5 : vector<8x8xf32>
    %c0_4 = arith.constant 0 : index
    %c0_5 = arith.constant 0 : index
    %7 = vector.load %arg2[%c0_4, %c0_5] : memref<8x8xf32, #tpu.memory_space<vmem>>, vector<8x8xf32>
    tpu.vector_store %arg2[%c0_4, %c0_5], %6 {strides = array<i32>} : memref<8x8xf32, #tpu.memory_space<vmem>>, vector<8x8xf32>,
    %c0_i32_6 = arith.constant 0 : i32
    %8 = arith.cmpi eq, %arg0, %c0_i32_6 : i32
    %9 = arith.extui %8 : i1 to i32
    %c0_i32_7 = arith.constant 0 : i32
    %10 = arith.cmpi ne, %9, %c0_i32_7 : i32
    scf.if %10 {
      %c0_8 = arith.constant 0 : index
      %c0_9 = arith.constant 0 : index
      %11 = vector.load %arg2[%c0_8, %c0_9] : memref<8x8xf32, #tpu.memory_space<vmem>>, vector<8x8xf32>
      %cst_10 = arith.constant 4.8828125E-4 : f32
      %12 = vector.broadcast %cst_10 : f32 to vector<8x8xf32>
      %13 = arith.mulf %11, %12 : vector<8x8xf32>
      %c0_11 = arith.constant 0 : index
      %c0_12 = arith.constant 0 : index
      %14 = vector.load %arg2[%c0_11, %c0_12] : memref<8x8xf32, #tpu.memory_space<vmem>>, vector<8x8xf32>
      tpu.vector_store %arg2[%c0_11, %c0_12], %13 {strides = array<i32>} : memref<8x8xf32, #tpu.memory_space<vmem>>, vector<8x8xf32>,
    } else {
    }
    return
  }
  func.func @transform_0(%arg0: i32) -> (i32, i32) {
    %c0_i32 = arith.constant 0 : i32
    %c0_i32_0 = arith.constant 0 : i32
    return %c0_i32, %arg0 : i32, i32
  }
  func.func @transform_1(%arg0: i32) -> (i32, i32) {
    %c0_i32 = arith.constant 0 : i32
    %c0_i32_0 = arith.constant 0 : i32
    %c0_i32_1 = arith.constant 0 : i32
    return %c0_i32, %c0_i32_0 : i32, i32
  }
}

</mosaic_0001>

<llo_original>
// kernel: tpu_custom_call.1
$region0: #{tpu_custom_call.1}
  #allocation0 [shape = 'u32[]', space=smem, size = 0x4, offset = 0x4, fixed_abs, tag = 'smem constant byte address 0x4 - core index']
  #allocation1 [shape = 'u32[72,128]{1,0:T(1,128)}', space=vmem, size = 0x9000, scoped, tag = 'internal scratch']
  %s0 = inlined_call_operand.hbm [shape: f32[8,256], index: 0, kind: input, shape index: {}]
  %s1 = inlined_call_operand.hbm [shape: f32[8,8], index: 1, kind: output, shape index: {}]
  %s2 = sld [smem:[#allocation0]]
  $region26: #{tpu_custom_call.1} parent=0
    _
  %s4 = ssub.s32 1, %s2
  %s5 = scalar_select 0, %s4, %s2
  $region1: #{tpu_custom_call.1} parent=0
    #allocation2 [shape = 'u8[8192]{0}', space=vmem, size = 0x2000, scoped, tag = 'input window, operand 0, single buffered']
    #allocation3 [shape = 's32[1]{0}', space=sflag, size = 0x4, scoped, tag = 'scoped memory for tpu_custom_call.1']
    #allocation4 [shape = 's32[1]{0}', space=sflag, size = 0x4, scoped, tag = 'scoped memory for tpu_custom_call.1']
    #allocation5 [shape = 'u8[4096]{0}', space=vmem, size = 0x1000, scoped, tag = 'output window, operand 0, single buffered']
    %6 = vsyncpa [#allocation3], 0
    %7 = vsyncpa [#allocation4], 0
    // Predicated region
    $region2: #{tpu_custom_call.1} parent=1 // pred_check
      _
    $region3: #{tpu_custom_call.1} parent=1 // pred_check_branch
      %9 = sbr.rel (0) target = $region5
    $region4: #{tpu_custom_call.1} parent=1 // pred_region
      %11 = vsyncadd [#allocation3], 0
      %s13 = sshll.u32 %s0, 4
      %s14 = int_to_ptr.hbm [resolvable:$true] %s13
      %s15 = sshll.u32 [#allocation2], 4
      %s16 = int_to_ptr.vmem [resolvable:$true] %s15
      %18 = dma.hbm_to_vmem [thread:$0]  %s14, 256, %s16, [#allocation3]
    $region5: #{tpu_custom_call.1} parent=1 // pred_fallthru
      _
    // Predicated region
    $region6: #{tpu_custom_call.1} parent=1 // pred_check
      _
    $region7: #{tpu_custom_call.1} parent=1 // pred_check_branch
      %20 = sbr.rel (0) target = $region9
    $region8: #{tpu_custom_call.1} parent=1 // pred_region
      %22 = dma.done [#allocation3], 256
    $region9: #{tpu_custom_call.1} parent=1 // pred_fallthru
      _
    %p23 = scmp.eq.s32.totalorder 0, 0
    // Predicated region
    $region10: #{tpu_custom_call.1} parent=1 // pred_check
      %p24 = pneg %p23
    $region11: #{tpu_custom_call.1} parent=1 // pred_check_branch
      %26 = sbr.rel (%p24) target = $region13
    $region12: #{tpu_custom_call.1} parent=1 // pred_region
      %vm27 = vcmask 64512
      %28 = vst.msk [vmem:[#allocation5] sm:$0xff] %vm27, 0.0
    $region13: #{tpu_custom_call.1} parent=1 // pred_fallthru
      _
    %v29 = vld [vmem:[#allocation5] sm:$0xff]
    %v30 = vld [vmem:[#allocation2] sm:$0xff]
    %v31 = vld [vmem:[#allocation2 + $0x8] sm:$0xff]
    %32 = vmatpush.xpose.msra.mxu0 0.0
    %33 = vmatpush.xpose.msra.mxu0 0.0
    %34 = vmatpush.xpose.msra.mxu0 0.0
    %35 = vmatpush.xpose.msra.mxu0 0.0
    %36 = vmatpush.xpose.msra.mxu0 0.0
    %37 = vmatpush.xpose.msra.mxu0 0.0
    %38 = vmatpush.xpose.msra.mxu0 0.0
    %39 = vmatpush.xpose.msra.mxu0 0.0
    %40 = vmatpush.xpose.msra.mxu0 0.0
    %41 = vmatpush.xpose.msra.mxu0 0.0
    %42 = vmatpush.xpose.msra.mxu0 0.0
    %43 = vmatpush.xpose.msra.mxu0 0.0
    %44 = vmatpush.xpose.msra.mxu0 0.0
    %45 = vmatpush.xpose.msra.mxu0 0.0
    %46 = vmatpush.xpose.msra.mxu0 0.0
    %47 = vmatpush.xpose.msra.mxu0 %v30
    %48 = vmatmul.f32.gmra.mxu0 %v30
    %v49 = vpop.f32.mrf.mxu0
    %v50 = vadd.f32 0.0, %v49
    %51 = vdwg.mxu0
    %52 = vmatpush.xpose.msra.mxu0 0.0
    %53 = vmatpush.xpose.msra.mxu0 0.0
    %54 = vmatpush.xpose.msra.mxu0 0.0
    %55 = vmatpush.xpose.msra.mxu0 0.0
    %56 = vmatpush.xpose.msra.mxu0 0.0
    %57 = vmatpush.xpose.msra.mxu0 0.0
    %58 = vmatpush.xpose.msra.mxu0 0.0
    %59 = vmatpush.xpose.msra.mxu0 0.0
    %60 = vmatpush.xpose.msra.mxu0 0.0
    %61 = vmatpush.xpose.msra.mxu0 0.0
    %62 = vmatpush.xpose.msra.mxu0 0.0
    %63 = vmatpush.xpose.msra.mxu0 0.0
    %64 = vmatpush.xpose.msra.mxu0 0.0
    %65 = vmatpush.xpose.msra.mxu0 0.0
    %66 = vmatpush.xpose.msra.mxu0 0.0
    %67 = vmatpush.xpose.msra.mxu0 %v31
    %68 = vmatmul.f32.gmra.mxu0 %v31
    %v69 = vpop.f32.mrf.mxu0
    %v70 = vadd.f32 %v50, %v69
    %71 = vdwg.mxu0
    %v72 = vadd.f32 %v29, %v70
    %vm73 = vcmask 64512
    %74 = vst.msk [vmem:[#allocation5] sm:$0xff] %vm73, %v72
    // Predicated region
    $region14: #{tpu_custom_call.1} parent=1 // pred_check
      %p75 = pneg %p23
    $region15: #{tpu_custom_call.1} parent=1 // pred_check_branch
      %77 = sbr.rel (%p75) target = $region17
    $region16: #{tpu_custom_call.1} parent=1 // pred_region
      %v78 = vld [vmem:[#allocation5] sm:$0xff]
      %v79 = vmul.f32 %v78, 0.00048828125
      %80 = vst.msk [vmem:[#allocation5] sm:$0xff] %vm73, %v79
    $region17: #{tpu_custom_call.1} parent=1 // pred_fallthru
      _
    // Predicated region
    $region18: #{tpu_custom_call.1} parent=1 // pred_check
      _
    $region19: #{tpu_custom_call.1} parent=1 // pred_check_branch
      %82 = sbr.rel (0) target = $region21
    $region20: #{tpu_custom_call.1} parent=1 // pred_region
      %84 = vsyncadd [#allocation4], 0
      %s86 = sshll.u32 [#allocation5], 4
      %s87 = int_to_ptr.vmem [resolvable:$true] %s86
      %s88 = sshll.u32 %s1, 4
      %s89 = int_to_ptr.hbm [resolvable:$true] %s88
      %91 = dma.vmem_to_hbm [thread:$0]  %s87, 128, %s89, [#allocation4]
    $region21: #{tpu_custom_call.1} parent=1 // pred_fallthru
      _
    // Predicated region
    $region22: #{tpu_custom_call.1} parent=1 // pred_check
      _
    $region23: #{tpu_custom_call.1} parent=1 // pred_check_branch
      %93 = sbr.rel (0) target = $region25
    $region24: #{tpu_custom_call.1} parent=1 // pred_region
      %95 = dma.done [#allocation4], 128
    $region25: #{tpu_custom_call.1} parent=1 // pred_fallthru
      _
    %96 = vsyncpa [#allocation3], 1
    %97 = vsyncpa [#allocation4], 1

</llo_original>
